<compile_context>
chip_gen: v7x
topology: tpu7x:2x2x1
jax: 0.10.0
libtpu: 0.0.40
codegen_flags: <defaults>
</compile_context>

<pallas_src>
import functools
from typing import Optional, Union

import jax
import jax.numpy as jnp
from jax import lax
from jax.experimental import pallas as pl
from jax.experimental.pallas import tpu as pltpu


_LANE = 128       # TPU lane width; the stats slab is padded to this so the
                  # in-kernel transpose is fully (8, 128)-aligned.
_OUT_ROWS = 8     # rows of the lane-dense (8, N) stats output (sublane-aligned)


# --------------------------------------------------------------------------
# kernels
# --------------------------------------------------------------------------
def _softmax_row_stats(x, t):
    """Stable per-row softmax pieces + exact soft-target CE loss (keepdims)."""
    m = jnp.max(x, axis=-1, keepdims=True)
    s = x - m
    e = jnp.exp(s)
    denom = jnp.sum(e, axis=-1, keepdims=True)          # >= 1, log is safe
    # loss = sum(-t*(s - log(denom))) = log(denom)*sum(t) - sum(t*s)
    t_sum = jnp.sum(t, axis=-1, keepdims=True)
    ts_sum = jnp.sum(t * s, axis=-1, keepdims=True)
    loss = jnp.log(denom) * t_sum - ts_sum
    return e, denom, loss


def _emit_stats(out_ref, cols):
    """Pack per-row (bn, 1) columns into a lane-dense (8, bn) slab, one store.

    The slab is (bn, 128) f32 with bn a multiple of 8, so the transpose is a
    fully tile-aligned XLU granule transpose and the HBM writeback of the
    (8, block_n) output block is a dense, unmasked store.
    """
    bn = cols[0].shape[0]
    lane = lax.broadcasted_iota(jnp.int32, (bn, _LANE), 1)
    slab = jnp.where(lane == 0, cols[0], 0.0)
    for r in range(1, len(cols)):
        slab = slab + jnp.where(lane == r, cols[r], 0.0)
    out_ref[...] = jnp.transpose(slab)[0:_OUT_ROWS, :]


def _ce_info_kernel_tensor_lam(x_ref, t_ref, out_ref):
    """Tensor-lam variant: rows [loss, max|t - p|]; no gather indices needed."""
    x = x_ref[...].astype(jnp.float32)
    t = t_ref[...].astype(jnp.float32)
    e, denom, loss = _softmax_row_stats(x, t)
    # p only feeds |t - p|; the approx reciprocal runs on the otherwise-idle EUP.
    p = e * pl.reciprocal(denom, approx=True)
    maxabs = jnp.max(jnp.abs(t - p), axis=-1, keepdims=True)
    _emit_stats(out_ref, (loss, maxabs))


def _ce_info_kernel_float_lam(x_ref, t_ref, idx_ref, out_ref):
    """Float-lam variant: rows [loss, |t-p| at ot, |t-p| at ot_flip]."""
    x = x_ref[...].astype(jnp.float32)
    t = t_ref[...].astype(jnp.float32)
    e, denom, loss = _softmax_row_stats(x, t)
    p = e * pl.reciprocal(denom, approx=True)
    absdiff = jnp.abs(t - p)

    bn, nc = x.shape
    col = lax.broadcasted_iota(jnp.int32, (bn, nc), 1)
    # Masked-reduce gather: exactly one match per row (indices assumed in [0, C)),
    # so the sum equals the gathered value.
    d_ot = jnp.sum(jnp.where(col == idx_ref[:, 0:1], absdiff, 0.0),
                   axis=-1, keepdims=True)
    d_otf = jnp.sum(jnp.where(col == idx_ref[:, 1:2], absdiff, 0.0),
                    axis=-1, keepdims=True)
    _emit_stats(out_ref, (loss, d_ot, d_otf))


# --------------------------------------------------------------------------
# tiling / VMEM heuristics (chip-aware)
# --------------------------------------------------------------------------
def _tpu_vmem_capacity() -> int:
    try:
        return int(pltpu.get_tpu_info().vmem_capacity_bytes)
    except Exception:
        return 64 * 1024 * 1024          # conservative (v7x-sized) fallback


def _per_row_vmem_bytes(C: int, in_itemsize: int) -> int:
    # 2 inputs x 2 pipeline buffers x actual input dtype, plus ~6 live f32
    # C-wide temporaries (x_f32, t_f32, s, e, p/absdiff, iota/select temp),
    # plus the 128-wide f32 slab (and its transpose) for the lane-dense output.
    return C * (2 * 2 * in_itemsize + 6 * 4) + 2 * _LANE * 4


def _choose_block_n(n_pad: int, C: int, in_itemsize: int) -> int:
    if n_pad <= 128:
        return n_pad
    budget = _tpu_vmem_capacity() // 3           # leave headroom for Mosaic scratch
    bn = budget // max(_per_row_vmem_bytes(C, in_itemsize), 1)
    cap = 1024 if C <= 2048 else 512             # bigger tiles when C is small (v6e)
    bn = min(bn, cap, n_pad)
    if bn < 128:
        # TODO(synk): vocab-scale C needs a class-axis grid with an online
        # softmax; for now take a 128-row tile and let vmem_limit stretch.
        return min(128, n_pad)
    bn = (bn // 128) * 128                       # lane-dense out block needs %128
    if bn >= n_pad:
        # Prefer >= 2 grid steps: DMA pipelining overlaps, and the second
        # TensorCore on v7x gets work on the "parallel" batch axis.
        half = ((n_pad // 2) // 128) * 128
        bn = half if half >= 128 else n_pad
    return bn


def _vmem_limit_bytes(block_n: int, C: int, in_itemsize: int) -> int:
    cap = _tpu_vmem_capacity()
    need = block_n * _per_row_vmem_bytes(C, in_itemsize) + (4 << 20)
    # v7x (64 MiB physical) -> 32 MiB; v5e/v6e (128 MiB) -> up to 64 MiB.
    return int(min(cap // 2, max(need, 32 << 20)))


# --------------------------------------------------------------------------
# pallas_call wrappers
# --------------------------------------------------------------------------
def _grid_and_specs(n_pad, C, block_n, with_idx):
    grid = (pl.cdiv(n_pad, block_n),)
    in_specs = [pl.BlockSpec((block_n, C), lambda i: (i, 0)),
                pl.BlockSpec((block_n, C), lambda i: (i, 0))]
    if with_idx:
        in_specs.append(pl.BlockSpec((block_n, 2), lambda i: (i, 0)))
    out_specs = pl.BlockSpec((_OUT_ROWS, block_n), lambda i: (0, i))
    return grid, in_specs, out_specs


@functools.partial(jax.jit, static_argnames=("block_n", "vmem_limit"))
def _ce_info_tensor_lam(x, target, *, block_n, vmem_limit):
    n_pad, C = x.shape
    grid, in_specs, out_specs = _grid_and_specs(n_pad, C, block_n, with_idx=False)
    return pl.pallas_call(
        _ce_info_kernel_tensor_lam,
        out_shape=jax.ShapeDtypeStruct((_OUT_ROWS, n_pad), jnp.float32),
        grid_spec=pltpu.PrefetchScalarGridSpec(
            num_scalar_prefetch=0, grid=grid,
            in_specs=in_specs, out_specs=out_specs),
        compiler_params=pltpu.CompilerParams(
            dimension_semantics=("parallel",),
            vmem_limit_bytes=vmem_limit),
    )(x, target)


@functools.partial(jax.jit, static_argnames=("block_n", "vmem_limit"))
def _ce_info_float_lam(x, target, idx, *, block_n, vmem_limit):
    n_pad, C = x.shape
    grid, in_specs, out_specs = _grid_and_specs(n_pad, C, block_n, with_idx=True)
    return pl.pallas_call(
        _ce_info_kernel_float_lam,
        out_shape=jax.ShapeDtypeStruct((_OUT_ROWS, n_pad), jnp.float32),
        grid_spec=pltpu.PrefetchScalarGridSpec(
            num_scalar_prefetch=0, grid=grid,
            in_specs=in_specs, out_specs=out_specs),
        compiler_params=pltpu.CompilerParams(
            dimension_semantics=("parallel",),
            vmem_limit_bytes=vmem_limit),
    )(x, target, idx)


# --------------------------------------------------------------------------
# public wrapper (same semantics as the PyTorch module forward)
# --------------------------------------------------------------------------
def soft_target_cross_entropy_info_v2(
    x: jax.Array,
    target: jax.Array,
    lam: Union[float, jax.Array],
    *,
    original_targets: Optional[jax.Array] = None,
    block_n: Optional[int] = None,
):
    """Forward pass of SoftTargetCrossEntropyInfoV2. Returns (loss, scores).

    x, target: (N, C).  lam: Python float or (N,) array.
    original_targets: optional precomputed hard labels (= argmax(target, -1));
      passing them removes the extra full HBM pass over `target` on the
      float-lam path (the kernel itself streams x and target exactly once).
      Indices must be in [0, C).
    On HBM-bound chips (v5e) pass x/target in bf16 — the kernel upcasts to f32.
    """
    N, C = x.shape
    tensor_lam = isinstance(lam, jax.Array)
    in_itemsize = max(jnp.dtype(x.dtype).itemsize, jnp.dtype(target.dtype).itemsize)

    idx = None
    if not tensor_lam:
        if original_targets is None:
            # TODO(synk): fusing this argmax into the producer (or into the kernel
            # via a paired forward/flipped-block grid) would remove one full HBM
            # pass over `target`; callers with hard labels should pass them in.
            ot = jnp.argmax(target, axis=-1)
        else:
            ot = original_targets
        ot = ot.astype(jnp.int32)
        if not (lam > 0.5):
            ot = jnp.flip(ot, axis=0)
        ot_flip = jnp.flip(ot, axis=0)
        idx = jnp.stack([ot, ot_flip], axis=1)          # one tiny (N, 2) stream

    # Pad the batch to a sublane multiple (rare; costs one extra copy).
    n_pad = ((N + 7) // 8) * 8
    if n_pad != N:
        pad = n_pad - N
        x = jnp.pad(x, ((0, pad), (0, 0)))
        target = jnp.pad(target, ((0, pad), (0, 0)))
        if idx is not None:
            idx = jnp.pad(idx, ((0, pad), (0, 0)))

    if block_n is None:
        block_n = _choose_block_n(n_pad, C, in_itemsize)
    else:
        block_n = min(int(block_n), n_pad)
        if block_n < n_pad:
            block_n = max(128, (block_n // 128) * 128)  # lane-dense out block needs %128
    vmem_limit = _vmem_limit_bytes(block_n, C, in_itemsize)

    if tensor_lam:
        stats = _ce_info_tensor_lam(x, target, block_n=block_n, vmem_limit=vmem_limit)
        loss = stats[0, :N]
        s = stats[1, :N]
        lam_f = lam.astype(jnp.float32)
        scores = (s + jnp.flip(s, axis=0)) / (lam_f + jnp.flip(1.0 - lam_f, axis=0))
    else:
        stats = _ce_info_float_lam(x, target, idx, block_n=block_n, vmem_limit=vmem_limit)
        loss = stats[0, :N]
        selfscores = stats[1, :N]
        mixscores = stats[2, :N]
        scores = selfscores + jnp.flip(mixscores, axis=0)
    return loss, scores


# --------------------------------------------------------------------------
# reference + tests
# --------------------------------------------------------------------------
def _reference(x, target, lam):
    x = x.astype(jnp.float32)
    target = target.astype(jnp.float32)
    logp = jax.nn.log_softmax(x, axis=-1)
    p = jax.nn.softmax(x, axis=-1)
    loss = jnp.sum(-target * logp, axis=-1)
    N = x.shape[0]
    if isinstance(lam, jax.Array):
        s = jnp.max(jnp.abs(target - p), axis=-1)
        lam_f = lam.astype(jnp.float32)
        scores = (s + jnp.flip(s, 0)) / (lam_f + jnp.flip(1.0 - lam_f, 0))
    else:
        ot = jnp.argmax(target, axis=-1)
        if not (lam > 0.5):
            ot = jnp.flip(ot, 0)
        rows = jnp.arange(N)
        selfscores = jnp.abs(target[rows, ot] - p[rows, ot])
        otf = jnp.flip(ot, 0)
        mixscores = jnp.abs(target[rows, otf] - p[rows, otf])
        scores = selfscores + jnp.flip(mixscores, 0)
    return loss, scores


def _check(x, target, lam, ok, block_n=None, original_targets=None):
    loss, scores = soft_target_cross_entropy_info_v2(
        x, target, lam, block_n=block_n, original_targets=original_targets)
    jax.block_until_ready((loss, scores))
    rloss, rscores = _reference(x, target, lam)
    ok &= bool(jnp.allclose(loss, rloss, atol=1e-4, rtol=1e-5))
    # p uses the EUP approx reciprocal, so the score terms carry ~1e-3 relative
    # error; loss stays on the exact log path.
    ok &= bool(jnp.allclose(scores, rscores, atol=5e-3, rtol=5e-3))
    return ok


if __name__ == "__main__":
    key = jax.random.PRNGKey(0)
    keys = jax.random.split(key, 10)
    ok = True

    # ---- case A: tiny single-block (N=8, C=32) ---------------------------
    N, C = 8, 32
    x = jax.random.normal(keys[0], (N, C), dtype=jnp.float32)
    target = jax.nn.softmax(
        jax.random.normal(keys[1], (N, C), dtype=jnp.float32) * 3.0, axis=-1)
    ok = _check(x, target, 0.7, ok)                               # float lam > 0.5
    ok = _check(x, target, 0.3, ok)                               # float lam <= 0.5
    ok = _check(x, target, 0.7, ok,
                original_targets=jnp.argmax(target, axis=-1))     # precomputed labels
    lam_t = jax.random.uniform(keys[2], (N,), dtype=jnp.float32)
    ok = _check(x, target, lam_t, ok)                             # tensor lam

    # ---- case B: multi-block grid, lane-dense (8, N) output (N=256, bn=128)
    N2, C2 = 256, 64
    x2 = jax.random.normal(keys[3], (N2, C2), dtype=jnp.float32)
    target2 = jax.nn.softmax(
        jax.random.normal(keys[4], (N2, C2), dtype=jnp.float32) * 3.0, axis=-1)
    ok = _check(x2, target2, 0.7, ok, block_n=128)
    lam_t2 = jax.random.uniform(keys[5], (N2,), dtype=jnp.float32)
    ok = _check(x2, target2, lam_t2, ok, block_n=128)

    # ---- case C: batch not a multiple of 8 (wrapper pads), N=20 -----------
    N3, C3 = 20, 128
    x3 = jax.random.normal(keys[6], (N3, C3), dtype=jnp.float32)
    target3 = jax.nn.softmax(
        jax.random.normal(keys[7], (N3, C3), dtype=jnp.float32) * 3.0, axis=-1)
    ok = _check(x3, target3, 0.3, ok)

    # ---- case D: bf16 inputs (v5e: halve HBM traffic; kernel upcasts) -----
    x4 = x2.astype(jnp.bfloat16)
    target4 = target2.astype(jnp.bfloat16)
    ok = _check(x4, target4, 0.7, ok, block_n=128)

    if ok:
        print("KERNEL_OK")
    else:
        print("KERNEL_MISMATCH")
</pallas_src>

<mosaic_0001>
module attributes {stable_mosaic.version = 11 : i64} {
  func.func @_ce_info_kernel_float_lam(%arg0: i32, %arg1: memref<8x32xf32, #tpu.memory_space<vmem>>, %arg2: memref<8x32xf32, #tpu.memory_space<vmem>>, %arg3: memref<8x2xi32, #tpu.memory_space<vmem>>, %arg4: memref<8x8xf32, #tpu.memory_space<vmem>>) attributes {dimension_semantics = [#tpu.dimension_semantics<parallel>], iteration_bounds = array<i64: 1>, scalar_prefetch = 0 : i64, scratch_operands = 0 : i64, tpu.core_type = #tpu.core_type<tc>, window_params = [{transform_indices = @transform_0, window_bounds = array<i64: 8, 32>}, {transform_indices = @transform_1, window_bounds = array<i64: 8, 32>}, {transform_indices = @transform_2, window_bounds = array<i64: 8, 2>}, {transform_indices = @transform_3, window_bounds = array<i64: 8, 8>}]} {
    %c0 = arith.constant 0 : index
    %c0_0 = arith.constant 0 : index
    %0 = vector.load %arg1[%c0, %c0_0] : memref<8x32xf32, #tpu.memory_space<vmem>>, vector<8x32xf32>
    %c0_1 = arith.constant 0 : index
    %c0_2 = arith.constant 0 : index
    %1 = vector.load %arg2[%c0_1, %c0_2] : memref<8x32xf32, #tpu.memory_space<vmem>>, vector<8x32xf32>
    %cst = arith.constant dense<0xFF800000> : vector<8xf32>
    %2 = vector.multi_reduction <maximumf>, %0, %cst [1] : vector<8x32xf32> to vector<8xf32>
    %3 = vector.shape_cast %2 : vector<8xf32> to vector<8x1xf32>
    %4 = vector.broadcast %3 : vector<8x1xf32> to vector<8x32xf32>
    %5 = arith.subf %0, %4 : vector<8x32xf32>
    %6 = math.exp %5 : vector<8x32xf32>
    %cst_3 = arith.constant dense<0.000000e+00> : vector<8xf32>
    %7 = vector.multi_reduction <add>, %6, %cst_3 [1] : vector<8x32xf32> to vector<8xf32>
    %8 = vector.shape_cast %7 : vector<8xf32> to vector<8x1xf32>
    %cst_4 = arith.constant dense<0.000000e+00> : vector<8xf32>
    %9 = vector.multi_reduction <add>, %1, %cst_4 [1] : vector<8x32xf32> to vector<8xf32>
    %10 = vector.shape_cast %9 : vector<8xf32> to vector<8x1xf32>
    %11 = arith.mulf %1, %5 : vector<8x32xf32>
    %cst_5 = arith.constant dense<0.000000e+00> : vector<8xf32>
    %12 = vector.multi_reduction <add>, %11, %cst_5 [1] : vector<8x32xf32> to vector<8xf32>
    %13 = vector.shape_cast %12 : vector<8xf32> to vector<8x1xf32>
    %14 = math.log %8 : vector<8x1xf32>
    %15 = arith.mulf %14, %10 : vector<8x1xf32>
    %16 = arith.subf %15, %13 : vector<8x1xf32>
    %17 = tpu.reciprocal %8 {approx = true} : vector<8x1xf32> -> vector<8x1xf32>
    %18 = vector.broadcast %17 : vector<8x1xf32> to vector<8x32xf32>
    %19 = arith.mulf %6, %18 : vector<8x32xf32>
    %20 = arith.subf %1, %19 : vector<8x32xf32>
    %21 = math.absf %20 : vector<8x32xf32>
    %22 = tpu.iota {dimensions = array<i32: 1>} : vector<8x32xi32>
    %c0_6 = arith.constant 0 : index
    %c0_7 = arith.constant 0 : index
    %23 = vector.load %arg3[%c0_6, %c0_7] : memref<8x2xi32, #tpu.memory_space<vmem>>, vector<8x1xi32>
    %24 = vector.broadcast %23 : vector<8x1xi32> to vector<8x32xi32>
    %25 = arith.cmpi eq, %22, %24 : vector<8x32xi32>
    %cst_8 = arith.constant 0.000000e+00 : f32
    %26 = vector.broadcast %cst_8 : f32 to vector<8x32xf32>
    %27 = arith.select %25, %21, %26 : vector<8x32xi1>, vector<8x32xf32>
    %cst_9 = arith.constant dense<0.000000e+00> : vector<8xf32>
    %28 = vector.multi_reduction <add>, %27, %cst_9 [1] : vector<8x32xf32> to vector<8xf32>
    %29 = vector.shape_cast %28 : vector<8xf32> to vector<8x1xf32>
    %c0_10 = arith.constant 0 : index
    %c1 = arith.constant 1 : index
    %30 = vector.load %arg3[%c0_10, %c1] : memref<8x2xi32, #tpu.memory_space<vmem>>, vector<8x1xi32>
    %31 = vector.broadcast %30 : vector<8x1xi32> to vector<8x32xi32>
    %32 = arith.cmpi eq, %22, %31 : vector<8x32xi32>
    %cst_11 = arith.constant 0.000000e+00 : f32
    %33 = vector.broadcast %cst_11 : f32 to vector<8x32xf32>
    %34 = arith.select %32, %21, %33 : vector<8x32xi1>, vector<8x32xf32>
    %cst_12 = arith.constant dense<0.000000e+00> : vector<8xf32>
    %35 = vector.multi_reduction <add>, %34, %cst_12 [1] : vector<8x32xf32> to vector<8xf32>
    %36 = vector.shape_cast %35 : vector<8xf32> to vector<8x1xf32>
    %37 = tpu.iota {dimensions = array<i32: 1>} : vector<8x128xi32>
    %c0_i32 = arith.constant 0 : i32
    %38 = vector.broadcast %c0_i32 : i32 to vector<8x128xi32>
    %39 = arith.cmpi eq, %37, %38 : vector<8x128xi32>
    %cst_13 = arith.constant 0.000000e+00 : f32
    %40 = vector.shape_cast %16 : vector<8x1xf32> to vector<8x1xf32>
    %41 = vector.broadcast %40 : vector<8x1xf32> to vector<8x128xf32>
    %42 = vector.broadcast %cst_13 : f32 to vector<8x128xf32>
    %43 = arith.select %39, %41, %42 : vector<8x128xi1>, vector<8x128xf32>
    %c1_i32 = arith.constant 1 : i32
    %44 = vector.broadcast %c1_i32 : i32 to vector<8x128xi32>
    %45 = arith.cmpi eq, %37, %44 : vector<8x128xi32>
    %cst_14 = arith.constant 0.000000e+00 : f32
    %46 = vector.shape_cast %29 : vector<8x1xf32> to vector<8x1xf32>
    %47 = vector.broadcast %46 : vector<8x1xf32> to vector<8x128xf32>
    %48 = vector.broadcast %cst_14 : f32 to vector<8x128xf32>
    %49 = arith.select %45, %47, %48 : vector<8x128xi1>, vector<8x128xf32>
    %50 = arith.addf %43, %49 : vector<8x128xf32>
    %c2_i32 = arith.constant 2 : i32
    %51 = vector.broadcast %c2_i32 : i32 to vector<8x128xi32>
    %52 = arith.cmpi eq, %37, %51 : vector<8x128xi32>
    %cst_15 = arith.constant 0.000000e+00 : f32
    %53 = vector.shape_cast %36 : vector<8x1xf32> to vector<8x1xf32>
    %54 = vector.broadcast %53 : vector<8x1xf32> to vector<8x128xf32>
    %55 = vector.broadcast %cst_15 : f32 to vector<8x128xf32>
    %56 = arith.select %52, %54, %55 : vector<8x128xi1>, vector<8x128xf32>
    %57 = arith.addf %50, %56 : vector<8x128xf32>
    %58 = tpu.transpose %57, [1, 0] : vector<8x128xf32> -> vector<128x8xf32>
    %59 = vector.extract_strided_slice %58 {offsets = [0, 0], sizes = [8, 8], strides = [1, 1]} : vector<128x8xf32> to vector<8x8xf32>
    %c0_16 = arith.constant 0 : index
    %c0_17 = arith.constant 0 : index
    %60 = vector.load %arg4[%c0_16, %c0_17] : memref<8x8xf32, #tpu.memory_space<vmem>>, vector<8x8xf32>
    tpu.vector_store %arg4[%c0_16, %c0_17], %59 {strides = array<i32>} : memref<8x8xf32, #tpu.memory_space<vmem>>, vector<8x8xf32>,
    return
  }
  func.func @transform_0(%arg0: i32) -> (i32, i32) {
    %c0_i32 = arith.constant 0 : i32
    %c0_i32_0 = arith.constant 0 : i32
    return %arg0, %c0_i32 : i32, i32
  }
  func.func @transform_1(%arg0: i32) -> (i32, i32) {
    %c0_i32 = arith.constant 0 : i32
    %c0_i32_0 = arith.constant 0 : i32
    return %arg0, %c0_i32 : i32, i32
  }
  func.func @transform_2(%arg0: i32) -> (i32, i32) {
    %c0_i32 = arith.constant 0 : i32
    %c0_i32_0 = arith.constant 0 : i32
    return %arg0, %c0_i32 : i32, i32
  }
  func.func @transform_3(%arg0: i32) -> (i32, i32) {
    %c0_i32 = arith.constant 0 : i32
    %c0_i32_0 = arith.constant 0 : i32
    return %c0_i32, %arg0 : i32, i32
  }
}

</mosaic_0001>

<llo_original>
// kernel: _ce_info_float_lam.1
$region0: #{_ce_info_float_lam.1}
  #allocation0 [shape = 'u32[]', space=smem, size = 0x4, offset = 0x4, fixed_abs, tag = 'smem constant byte address 0x4 - core index']
  #allocation1 [shape = 'u32[144,128]{1,0:T(1,128)}', space=vmem, size = 0x12000, scoped, tag = 'internal scratch']
  %s0 = inlined_call_operand.vmem [shape: f32[8,32], index: 0, kind: input, shape index: {}]
  %s1 = inlined_call_operand.hbm [shape: f32[8,32], index: 1, kind: input, shape index: {}]
  %s2 = inlined_call_operand.vmem [shape: s32[8,2], index: 2, kind: input, shape index: {}]
  %s3 = inlined_call_operand.hbm [shape: f32[8,8], index: 3, kind: output, shape index: {}]
  %s4 = sld [smem:[#allocation0]]
  $region26: #{_ce_info_float_lam.1} parent=0
    _
  %s6 = ssub.s32 1, %s4
  %s7 = scalar_select 0, %s6, %s4
  $region1: #{_ce_info_float_lam.1} parent=0
    #allocation2 [shape = 'u8[4096]{0}', space=vmem, size = 0x1000, scoped, tag = 'input window, operand 1, single buffered']
    #allocation3 [shape = 's32[1]{0}', space=sflag, size = 0x4, scoped, tag = 'scoped memory for _ce_info_float_lam.1']
    #allocation4 [shape = 's32[1]{0}', space=sflag, size = 0x4, scoped, tag = 'scoped memory for _ce_info_float_lam.1']
    #allocation5 [shape = 'u8[4096]{0}', space=vmem, size = 0x1000, scoped, tag = 'output window, operand 0, single buffered']
    %8 = vsyncpa [#allocation3], 0
    %9 = vsyncpa [#allocation4], 0
    // Predicated region
    $region2: #{_ce_info_float_lam.1} parent=1 // pred_check
      _
    $region3: #{_ce_info_float_lam.1} parent=1 // pred_check_branch
      %11 = sbr.rel (0) target = $region5
    $region4: #{_ce_info_float_lam.1} parent=1 // pred_region
      _
    $region5: #{_ce_info_float_lam.1} parent=1 // pred_fallthru
      _
    // Predicated region
    $region6: #{_ce_info_float_lam.1} parent=1 // pred_check
      _
    $region7: #{_ce_info_float_lam.1} parent=1 // pred_check_branch
      %13 = sbr.rel (0) target = $region9
    $region8: #{_ce_info_float_lam.1} parent=1 // pred_region
      %s15 = ssub.s32 128, 128
      %16 = vsyncadd [#allocation3], %s15
      %s18 = sshll.u32 [#allocation2], 4
      %s19 = int_to_ptr.vmem [resolvable:$true] %s18
      %21 = dma.hbm_to_vmem [thread:$0]  %s1, 128, %s19, [#allocation3]
    $region9: #{_ce_info_float_lam.1} parent=1 // pred_fallthru
      _
    // Predicated region
    $region10: #{_ce_info_float_lam.1} parent=1 // pred_check
      _
    $region11: #{_ce_info_float_lam.1} parent=1 // pred_check_branch
      %23 = sbr.rel (0) target = $region13
    $region12: #{_ce_info_float_lam.1} parent=1 // pred_region
      _
    $region13: #{_ce_info_float_lam.1} parent=1 // pred_fallthru
      _
    // Predicated region
    $region14: #{_ce_info_float_lam.1} parent=1 // pred_check
      _
    $region15: #{_ce_info_float_lam.1} parent=1 // pred_check_branch
      %25 = sbr.rel (0) target = $region17
    $region16: #{_ce_info_float_lam.1} parent=1 // pred_region
      %26 = dma.done [#allocation3], 128
    $region17: #{_ce_info_float_lam.1} parent=1 // pred_fallthru
      _
    %v27 = vld [vmem:[%s0] sm:$0xff]
    %v28 = vld [vmem:[#allocation2] sm:$0xff]
    %vm29 = vcmask 261120
    %v30 = vsel %vm29, %v27, -inf
    %31 = vmax.xlane.f32.xlu0 %v30
    %v32 = vpop.xlane.xlu0 %31
    %v33 = vsub.f32 %v27, %v32
    %v34 = vmul.f32 %v33, 1.442695
    %v35 = vpow.pop %v34
    %v36 = vsel %vm29, %v35, 0.0
    %37 = vadd.xlane.f32.xlu0 %v36
    %v38 = vpop.xlane.xlu0 %37
    %v39 = vsel %vm29, %v28, 0.0
    %40 = vadd.xlane.f32.xlu0 %v39
    %v41 = vpop.xlane.xlu0 %40
    %v42 = vmul.f32 %v28, %v33
    %v43 = vsel %vm29, %v42, 0.0
    %44 = vadd.xlane.f32.xlu0 %v43
    %v45 = vpop.xlane.xlu0 %44
    %v46 = vlog2.pop %v38
    %v47 = vmul.f32 %v46, 0.6931472
    %v48 = vmul.f32 %v47, %v41
    %v49 = vsub.f32 %v48, %v45
    %v50 = vrcp.pop %v38
    %v51 = vmul.f32 %v35, %v50
    %v52 = vsub.f32 %v28, %v51
    %v53 = vand.u32 2147483647, %v52
    %v54 = vlaneseq
    %v55 = vand.u32 %v54, 127
    %v56 = vld [vmem:[%s2] sm:$0xff]
    %57 = vset.pattern.permute.xlu0 0
    %58 = vperm.xlu0 %57, %v56
    %v59 = vpop.permute.xlu0 %58
    %vm60 = vcmp.eq.s32.totalorder %v55, %v59
    %v61 = vsel %vm60, %v53, 0.0
    %v62 = vsel %vm29, %v61, 0.0
    %63 = vadd.xlane.f32.xlu0 %v62
    %v64 = vpop.xlane.xlu0 %63
    %65 = vset.pattern.permute.xlu0 1
    %66 = vperm.xlu0 %65, %v56
    %v67 = vpop.permute.xlu0 %66
    %vm68 = vcmp.eq.s32.totalorder %v55, %v67
    %v69 = vsel %vm68, %v53, 0.0
    %v70 = vsel %vm29, %v69, 0.0
    %71 = vadd.xlane.f32.xlu0 %v70
    %v72 = vpop.xlane.xlu0 %71
    %vm73 = vcmp.eq.s32.totalorder %v55, 0
    %v74 = vsel %vm73, %v49, 0.0
    %vm75 = vcmp.eq.s32.totalorder %v55, 1
    %v76 = vsel %vm75, %v64, 0.0
    %v77 = vadd.f32 %v74, %v76
    %vm78 = vcmp.eq.s32.totalorder %v55, 2
    %v79 = vsel %vm78, %v72, 0.0
    %v80 = vadd.f32 %v77, %v79
    %81 = vxpose.xlu0.b32.start [1/16] %v80, 128
    %82 = vxpose.xlu0.b32.cont [2/16] 0.0, 128
    %83 = vxpose.xlu0.b32.cont [3/16] 0.0, 128
    %84 = vxpose.xlu0.b32.cont [4/16] 0.0, 128
    %85 = vxpose.xlu0.b32.cont [5/16] 0.0, 128
    %86 = vxpose.xlu0.b32.cont [6/16] 0.0, 128
    %87 = vxpose.xlu0.b32.cont [7/16] 0.0, 128
    %88 = vxpose.xlu0.b32.cont [8/16] 0.0, 128
    %89 = vxpose.xlu0.b32.cont [9/16] 0.0, 128
    %90 = vxpose.xlu0.b32.cont [10/16] 0.0, 128
    %91 = vxpose.xlu0.b32.cont [11/16] 0.0, 128
    %92 = vxpose.xlu0.b32.cont [12/16] 0.0, 128
    %93 = vxpose.xlu0.b32.cont [13/16] 0.0, 128
    %94 = vxpose.xlu0.b32.cont [14/16] 0.0, 128
    %95 = vxpose.xlu0.b32.cont [15/16] 0.0, 128
    %96 = vxpose.xlu0.b32.end [16/16] 0.0, 128
    %v97 = vpop.trf.xlu0
    %v98 = vpop.trf.xlu0
    %v99 = vpop.trf.xlu0
    %v100 = vpop.trf.xlu0
    %v101 = vpop.trf.xlu0
    %v102 = vpop.trf.xlu0
    %v103 = vpop.trf.xlu0
    %v104 = vpop.trf.xlu0
    %v105 = vpop.trf.xlu0
    %v106 = vpop.trf.xlu0
    %v107 = vpop.trf.xlu0
    %v108 = vpop.trf.xlu0
    %v109 = vpop.trf.xlu0
    %v110 = vpop.trf.xlu0
    %v111 = vpop.trf.xlu0
    %v112 = vpop.trf.xlu0
    %vm113 = vcmask 64512
    %114 = vst.msk [vmem:[#allocation5] sm:$0xff] %vm113, %v97
    // Predicated region
    $region18: #{_ce_info_float_lam.1} parent=1 // pred_check
      _
    $region19: #{_ce_info_float_lam.1} parent=1 // pred_check_branch
      %116 = sbr.rel (0) target = $region21
    $region20: #{_ce_info_float_lam.1} parent=1 // pred_region
      %s118 = ssub.s32 128, 128
      %119 = vsyncadd [#allocation4], %s118
      %s121 = sshll.u32 [#allocation5], 4
      %s122 = int_to_ptr.vmem [resolvable:$true] %s121
      %124 = dma.vmem_to_hbm [thread:$0]  %s122, 128, %s3, [#allocation4]
    $region21: #{_ce_info_float_lam.1} parent=1 // pred_fallthru
      _
    // Predicated region
    $region22: #{_ce_info_float_lam.1} parent=1 // pred_check
      _
    $region23: #{_ce_info_float_lam.1} parent=1 // pred_check_branch
      %126 = sbr.rel (0) target = $region25
    $region24: #{_ce_info_float_lam.1} parent=1 // pred_region
      %127 = dma.done [#allocation4], 128
    $region25: #{_ce_info_float_lam.1} parent=1 // pred_fallthru
      _
    %128 = vsyncpa [#allocation3], 1
    %129 = vsyncpa [#allocation4], 1

</llo_original>
